<compile_context>
chip_gen: v7x
topology: tpu7x:2x2x1
jax: 0.10.0
libtpu: 0.0.40
codegen_flags: <defaults>
</compile_context>

<pallas_src>
import functools

import jax
import jax.numpy as jnp
from jax import lax
from jax.experimental import pallas as pl
from jax.experimental.pallas import tpu as pltpu

IGNORE_INDEX = -100  # nn.CrossEntropyLoss default


def _round_up(x, m):
    return ((x + m - 1) // m) * m


def _ce_partial_kernel(logits_ref, targets_ref, out_ref, m_ref, l_ref, tl_ref,
                       *, n_total, c_total, tile_n, tile_c, ragged_c):
    i = pl.program_id(0)            # batch tile ("parallel")
    j = pl.program_id(1)            # class tile (reduction axis, last)
    last_j = pl.num_programs(1) - 1

    @pl.when(j == 0)
    def _init_row_state():
        m_ref[...] = jnp.full_like(m_ref, -jnp.inf)   # running row max
        l_ref[...] = jnp.zeros_like(l_ref)            # running sum-exp
        tl_ref[...] = jnp.zeros_like(tl_ref)          # target logit

    x = logits_ref[...].astype(jnp.float32)           # (tile_n, tile_c)
    t = targets_ref[...]                              # (tile_n, 1) int32
    lane = lax.broadcasted_iota(jnp.int32, x.shape, 1)

    if ragged_c:
        # Only the last class tile hangs past C; mask its padded lanes. For
        # non-last tiles limit == tile_c so the select is a no-op.
        limit = jnp.where(j == last_j, c_total - j * tile_c, tile_c)
        x = jnp.where(lane < limit, x, -jnp.inf)

    # Online log-sum-exp update (flash-softmax pattern).
    m_prev = m_ref[...]
    m_new = jnp.maximum(m_prev, jnp.max(x, axis=-1, keepdims=True))
    l_ref[...] = (l_ref[...] * jnp.exp(m_prev - m_new)
                  + jnp.sum(jnp.exp(x - m_new), axis=-1, keepdims=True))
    m_ref[...] = m_new

    # Gather the target logit: exactly one class tile holds it per row.
    # Compare against the tile-local target index (no global-column add).
    # TODO(synk): on v7x consider hoisting this gather to a wrapper-side
    # take_along_axis to drop one cross-lane reduction per tile.
    t_local = t - j * tile_c
    tl_ref[...] += jnp.sum(jnp.where(lane == t_local, x, 0.0),
                           axis=-1, keepdims=True)

    @pl.when(j == last_j)
    def _finalize_rows():
        row = lax.broadcasted_iota(jnp.int32, (tile_n, 1), 0) + i * tile_n
        valid = (row < n_total) & (t != IGNORE_INDEX)  # drop padded / ignored
        lse = jnp.log(l_ref[...]) + m_ref[...]
        ce = jnp.where(valid, lse - tl_ref[...], 0.0)  # (tile_n, 1)
        partial = jnp.sum(ce)                          # per-batch-tile sum
        out_ref[...] = jnp.broadcast_to(partial, out_ref.shape)  # (1, 8, 128)


def cross_entropy_loss(logits, targets, *, tile_n=None, tile_c=None):
    """PyTorch nn.CrossEntropyLoss() forward.

    logits:  (N, C) float32 or bfloat16 class scores
    targets: (N,)   int class indices (IGNORE_INDEX entries are skipped)
    returns: scalar mean CE over non-ignored targets
    """
    n, c = logits.shape
    targets2d = targets.astype(jnp.int32).reshape(n, 1)

    # (8,128)-aligned tiles regardless of N/C; ragged tails are masked
    # in-kernel. Caps keep the double-buffered logits tile <= 8 MiB (f32).
    if tile_n is None:
        tile_n = n if n < 8 else min(256, _round_up(n, 8))
    if tile_c is None:
        tile_c = c if c < 128 else min(4096, _round_up(c, 128))

    grid_i = pl.cdiv(n, tile_n)
    grid_j = pl.cdiv(c, tile_c)
    ragged_c = (c % tile_c) != 0

    kernel = functools.partial(
        _ce_partial_kernel, n_total=n, c_total=c,
        tile_n=tile_n, tile_c=tile_c, ragged_c=ragged_c)

    itemsize = jnp.dtype(logits.dtype).itemsize
    cost = pl.CostEstimate(
        flops=6 * n * c,                       # cast/mask/max/sub/acc/gather
        transcendentals=n * c + n,             # exp per element + log per row
        bytes_accessed=(n * c * itemsize       # logits streamed once
                        + grid_j * n * 4       # targets re-read per class tile
                        + grid_i * 8 * 128 * 4),
    )

    # Explicit scoped-VMEM limit: actual use (2 double-buffered logits tiles
    # + tiny targets/output/scratch) plus headroom, clamped to <=24 MiB so it
    # stays comfortably inside v7x's 64 MiB physical VMEM.
    vmem_need = 2 * tile_n * tile_c * itemsize + 4 * tile_n * 4 + (2 << 20)
    vmem_limit = int(min(max(vmem_need, 16 << 20), 24 << 20))

    partials = pl.pallas_call(
        kernel,
        out_shape=jax.ShapeDtypeStruct((grid_i, 8, 128), jnp.float32),
        grid_spec=pltpu.PrefetchScalarGridSpec(
            num_scalar_prefetch=0,
            grid=(grid_i, grid_j),
            in_specs=[
                # TODO(synk): profile for exposed DMA on v7x and add
                # pipeline_mode=pl.Buffered(3) here if present.
                pl.BlockSpec((tile_n, tile_c), lambda i, j: (i, j)),
                pl.BlockSpec((tile_n, 1), lambda i, j: (i, 0)),
            ],
            out_specs=pl.BlockSpec((1, 8, 128), lambda i, j: (i, 0, 0)),
            scratch_shapes=[
                pltpu.VMEM((tile_n, 1), jnp.float32),   # running row max
                pltpu.VMEM((tile_n, 1), jnp.float32),   # running sum-exp
                pltpu.VMEM((tile_n, 1), jnp.float32),   # target logit
            ],
        ),
        # Per-batch-tile partial outputs -> batch axis is safely "parallel"
        # (v7x megacore); class axis is the resident-state reduction.
        compiler_params=pltpu.CompilerParams(
            dimension_semantics=("parallel", "arbitrary"),
            vmem_limit_bytes=vmem_limit),
        cost_estimate=cost,
    )(logits, targets2d)

    ce_sum = jnp.sum(partials[:, 0, 0])
    n_valid = jnp.sum(targets2d != IGNORE_INDEX).astype(jnp.float32)
    return ce_sum / n_valid


def _ref_loss(logits_f32, targets, ignore=None):
    logp = jax.nn.log_softmax(logits_f32, axis=-1)
    idx = jnp.clip(targets, 0, logits_f32.shape[1] - 1)
    ce_rows = -jnp.take_along_axis(logp, idx[:, None], axis=-1)[:, 0]
    keep = (targets != IGNORE_INDEX).astype(jnp.float32)
    return jnp.sum(ce_rows * keep) / jnp.sum(keep)


if __name__ == "__main__":
    key = jax.random.PRNGKey(0)
    k_logits, k_tgt, k_logits2, k_tgt2 = jax.random.split(key, 4)

    # --- Test 1: small dense case (single tile), f32 -----------------------
    N, C = 8, 32
    logits = jax.random.normal(k_logits, (N, C), dtype=jnp.float32)
    targets = jax.random.randint(k_tgt, (N,), 0, C, dtype=jnp.int32)

    loss = cross_entropy_loss(logits, targets)
    jax.block_until_ready(loss)
    ref = _ref_loss(logits, targets)
    assert jnp.allclose(loss, ref, atol=1e-5, rtol=1e-5), (loss, ref)

    # --- Test 2: ignore_index=-100 rows drop from the mean -----------------
    targets_ig = targets.at[3].set(IGNORE_INDEX)
    loss_ig = cross_entropy_loss(logits, targets_ig)
    jax.block_until_ready(loss_ig)
    ref_ig = _ref_loss(logits, targets_ig)
    assert jnp.allclose(loss_ig, ref_ig, atol=1e-5, rtol=1e-5), (loss_ig, ref_ig)

    # --- Test 3: ragged multi-tile path (forced small tiles), f32 ----------
    N2, C2 = 20, 300
    logits2 = jax.random.normal(k_logits2, (N2, C2), dtype=jnp.float32)
    targets2 = jax.random.randint(k_tgt2, (N2,), 0, C2, dtype=jnp.int32)
    loss2 = cross_entropy_loss(logits2, targets2, tile_n=8, tile_c=128)
    jax.block_until_ready(loss2)
    ref2 = _ref_loss(logits2, targets2)
    assert jnp.allclose(loss2, ref2, atol=1e-5, rtol=1e-5), (loss2, ref2)

    # --- Test 4: bf16 logits (in-register upcast path) ---------------------
    logits_bf16 = logits.astype(jnp.bfloat16)
    loss_bf16 = cross_entropy_loss(logits_bf16, targets)
    jax.block_until_ready(loss_bf16)
    ref_bf16 = _ref_loss(logits_bf16.astype(jnp.float32), targets)
    assert jnp.allclose(loss_bf16, ref_bf16, atol=1e-4, rtol=1e-4), (
        loss_bf16, ref_bf16)

    print("KERNEL_OK")
</pallas_src>

<mosaic_0001>
module attributes {stable_mosaic.version = 11 : i64} {
  func.func @_ce_partial_kernel(%arg0: i32, %arg1: i32, %arg2: memref<8x32xf32, #tpu.memory_space<vmem>>, %arg3: memref<8x1xi32, #tpu.memory_space<vmem>>, %arg4: memref<1x8x128xf32, #tpu.memory_space<vmem>>, %arg5: memref<8x1xf32, #tpu.memory_space<vmem>>, %arg6: memref<8x1xf32, #tpu.memory_space<vmem>>, %arg7: memref<8x1xf32, #tpu.memory_space<vmem>>) attributes {dimension_semantics = [#tpu.dimension_semantics<parallel>, #tpu.dimension_semantics<arbitrary>], iteration_bounds = array<i64: 1, 1>, scalar_prefetch = 0 : i64, scratch_operands = 3 : i64, tpu.core_type = #tpu.core_type<tc>, window_params = [{transform_indices = @transform_0, window_bounds = array<i64: 8, 32>}, {transform_indices = @transform_1, window_bounds = array<i64: 8, 1>}, {transform_indices = @transform_2, window_bounds = array<i64: 1, 8, 128>}]} {
    %c0_i32 = arith.constant 0 : i32
    %0 = arith.cmpi eq, %arg1, %c0_i32 : i32
    %1 = arith.extui %0 : i1 to i32
    %c0_i32_0 = arith.constant 0 : i32
    %2 = arith.cmpi ne, %1, %c0_i32_0 : i32
    scf.if %2 {
      %cst_21 = arith.constant 0xFF800000 : f32
      %37 = vector.broadcast %cst_21 : f32 to vector<8x1xf32>
      %c0_22 = arith.constant 0 : index
      %c0_23 = arith.constant 0 : index
      %38 = vector.load %arg5[%c0_22, %c0_23] : memref<8x1xf32, #tpu.memory_space<vmem>>, vector<8x1xf32>
      tpu.vector_store %arg5[%c0_22, %c0_23], %37 {strides = array<i32>} : memref<8x1xf32, #tpu.memory_space<vmem>>, vector<8x1xf32>,
      %cst_24 = arith.constant 0.000000e+00 : f32
      %39 = vector.broadcast %cst_24 : f32 to vector<8x1xf32>
      %c0_25 = arith.constant 0 : index
      %c0_26 = arith.constant 0 : index
      %40 = vector.load %arg6[%c0_25, %c0_26] : memref<8x1xf32, #tpu.memory_space<vmem>>, vector<8x1xf32>
      tpu.vector_store %arg6[%c0_25, %c0_26], %39 {strides = array<i32>} : memref<8x1xf32, #tpu.memory_space<vmem>>, vector<8x1xf32>,
      %cst_27 = arith.constant 0.000000e+00 : f32
      %41 = vector.broadcast %cst_27 : f32 to vector<8x1xf32>
      %c0_28 = arith.constant 0 : index
      %c0_29 = arith.constant 0 : index
      %42 = vector.load %arg7[%c0_28, %c0_29] : memref<8x1xf32, #tpu.memory_space<vmem>>, vector<8x1xf32>
      tpu.vector_store %arg7[%c0_28, %c0_29], %41 {strides = array<i32>} : memref<8x1xf32, #tpu.memory_space<vmem>>, vector<8x1xf32>,
    } else {
    }
    %c0 = arith.constant 0 : index
    %c0_1 = arith.constant 0 : index
    %3 = vector.load %arg2[%c0, %c0_1] : memref<8x32xf32, #tpu.memory_space<vmem>>, vector<8x32xf32>
    %c0_2 = arith.constant 0 : index
    %c0_3 = arith.constant 0 : index
    %4 = vector.load %arg3[%c0_2, %c0_3] : memref<8x1xi32, #tpu.memory_space<vmem>>, vector<8x1xi32>
    %5 = tpu.iota {dimensions = array<i32: 1>} : vector<8x32xi32>
    %c0_4 = arith.constant 0 : index
    %c0_5 = arith.constant 0 : index
    %6 = vector.load %arg5[%c0_4, %c0_5] : memref<8x1xf32, #tpu.memory_space<vmem>>, vector<8x1xf32>
    %cst = arith.constant dense<0xFF800000> : vector<8xf32>
    %7 = vector.multi_reduction <maximumf>, %3, %cst [1] : vector<8x32xf32> to vector<8xf32>
    %8 = vector.shape_cast %7 : vector<8xf32> to vector<8x1xf32>
    %9 = arith.maximumf %6, %8 : vector<8x1xf32>
    %c0_6 = arith.constant 0 : index
    %c0_7 = arith.constant 0 : index
    %10 = vector.load %arg6[%c0_6, %c0_7] : memref<8x1xf32, #tpu.memory_space<vmem>>, vector<8x1xf32>
    %11 = arith.subf %6, %9 : vector<8x1xf32>
    %12 = math.exp %11 : vector<8x1xf32>
    %13 = arith.mulf %10, %12 : vector<8x1xf32>
    %14 = vector.broadcast %9 : vector<8x1xf32> to vector<8x32xf32>
    %15 = arith.subf %3, %14 : vector<8x32xf32>
    %16 = math.exp %15 : vector<8x32xf32>
    %cst_8 = arith.constant dense<0.000000e+00> : vector<8xf32>
    %17 = vector.multi_reduction <add>, %16, %cst_8 [1] : vector<8x32xf32> to vector<8xf32>
    %18 = vector.shape_cast %17 : vector<8xf32> to vector<8x1xf32>
    %19 = arith.addf %13, %18 : vector<8x1xf32>
    %c0_9 = arith.constant 0 : index
    %c0_10 = arith.constant 0 : index
    %20 = vector.load %arg6[%c0_9, %c0_10] : memref<8x1xf32, #tpu.memory_space<vmem>>, vector<8x1xf32>
    tpu.vector_store %arg6[%c0_9, %c0_10], %19 {strides = array<i32>} : memref<8x1xf32, #tpu.memory_space<vmem>>, vector<8x1xf32>,
    %c0_11 = arith.constant 0 : index
    %c0_12 = arith.constant 0 : index
    %21 = vector.load %arg5[%c0_11, %c0_12] : memref<8x1xf32, #tpu.memory_space<vmem>>, vector<8x1xf32>
    tpu.vector_store %arg5[%c0_11, %c0_12], %9 {strides = array<i32>} : memref<8x1xf32, #tpu.memory_space<vmem>>, vector<8x1xf32>,
    %c32_i32 = arith.constant 32 : i32
    %22 = arith.muli %arg1, %c32_i32 : i32
    %23 = vector.broadcast %22 : i32 to vector<8x1xi32>
    %24 = arith.subi %4, %23 : vector<8x1xi32>
    %c0_13 = arith.constant 0 : index
    %c0_14 = arith.constant 0 : index
    %25 = vector.load %arg7[%c0_13, %c0_14] : memref<8x1xf32, #tpu.memory_space<vmem>>, vector<8x1xf32>
    %26 = vector.broadcast %24 : vector<8x1xi32> to vector<8x32xi32>
    %27 = arith.cmpi eq, %5, %26 : vector<8x32xi32>
    %cst_15 = arith.constant 0.000000e+00 : f32
    %28 = vector.broadcast %cst_15 : f32 to vector<8x32xf32>
    %29 = arith.select %27, %3, %28 : vector<8x32xi1>, vector<8x32xf32>
    %cst_16 = arith.constant dense<0.000000e+00> : vector<8xf32>
    %30 = vector.multi_reduction <add>, %29, %cst_16 [1] : vector<8x32xf32> to vector<8xf32>
    %31 = vector.shape_cast %30 : vector<8xf32> to vector<8x1xf32>
    %32 = arith.addf %25, %31 : vector<8x1xf32>
    %c0_17 = arith.constant 0 : index
    %c0_18 = arith.constant 0 : index
    %33 = vector.load %arg7[%c0_17, %c0_18] : memref<8x1xf32, #tpu.memory_space<vmem>>, vector<8x1xf32>
    tpu.vector_store %arg7[%c0_17, %c0_18], %32 {strides = array<i32>} : memref<8x1xf32, #tpu.memory_space<vmem>>, vector<8x1xf32>,
    %c0_i32_19 = arith.constant 0 : i32
    %34 = arith.cmpi eq, %arg1, %c0_i32_19 : i32
    %35 = arith.extui %34 : i1 to i32
    %c0_i32_20 = arith.constant 0 : i32
    %36 = arith.cmpi ne, %35, %c0_i32_20 : i32
    scf.if %36 {
      %37 = tpu.iota {dimensions = array<i32: 0>} : vector<8x1xi32>
      %c8_i32 = arith.constant 8 : i32
      %38 = arith.muli %arg0, %c8_i32 : i32
      %39 = vector.broadcast %38 : i32 to vector<8x1xi32>
      %40 = arith.addi %37, %39 : vector<8x1xi32>
      %c8_i32_21 = arith.constant 8 : i32
      %41 = vector.broadcast %c8_i32_21 : i32 to vector<8x1xi32>
      %42 = arith.cmpi slt, %40, %41 : vector<8x1xi32>
      %c-100_i32 = arith.constant -100 : i32
      %43 = vector.broadcast %c-100_i32 : i32 to vector<8x1xi32>
      %44 = arith.cmpi ne, %4, %43 : vector<8x1xi32>
      %45 = arith.andi %42, %44 : vector<8x1xi1>
      %c0_22 = arith.constant 0 : index
      %c0_23 = arith.constant 0 : index
      %46 = vector.load %arg6[%c0_22, %c0_23] : memref<8x1xf32, #tpu.memory_space<vmem>>, vector<8x1xf32>
      %47 = math.log %46 : vector<8x1xf32>
      %c0_24 = arith.constant 0 : index
      %c0_25 = arith.constant 0 : index
      %48 = vector.load %arg5[%c0_24, %c0_25] : memref<8x1xf32, #tpu.memory_space<vmem>>, vector<8x1xf32>
      %49 = arith.addf %47, %48 : vector<8x1xf32>
      %c0_26 = arith.constant 0 : index
      %c0_27 = arith.constant 0 : index
      %50 = vector.load %arg7[%c0_26, %c0_27] : memref<8x1xf32, #tpu.memory_space<vmem>>, vector<8x1xf32>
      %51 = arith.subf %49, %50 : vector<8x1xf32>
      %cst_28 = arith.constant 0.000000e+00 : f32
      %52 = vector.broadcast %cst_28 : f32 to vector<8x1xf32>
      %53 = arith.select %45, %51, %52 : vector<8x1xi1>, vector<8x1xf32>
      %54 = vector.shape_cast %53 : vector<8x1xf32> to vector<1x8x1xf32>
      %cst_29 = arith.constant dense<0.000000e+00> : vector<1xf32>
      %55 = vector.multi_reduction <add>, %54, %cst_29 [1, 2] : vector<1x8x1xf32> to vector<1xf32>
      %56 = vector.shape_cast %55 : vector<1xf32> to vector<1x1x1xf32>
      %57 = vector.extract %56[0, 0, 0] : f32 from vector<1x1x1xf32>
      %58 = vector.broadcast %57 : f32 to vector<1x8x128xf32>
      %c0_30 = arith.constant 0 : index
      %c0_31 = arith.constant 0 : index
      %c0_32 = arith.constant 0 : index
      %59 = vector.load %arg4[%c0_30, %c0_31, %c0_32] : memref<1x8x128xf32, #tpu.memory_space<vmem>>, vector<1x8x128xf32>
      tpu.vector_store %arg4[%c0_30, %c0_31, %c0_32], %58 {strides = array<i32>} : memref<1x8x128xf32, #tpu.memory_space<vmem>>, vector<1x8x128xf32>,
    } else {
    }
    return
  }
  func.func @transform_0(%arg0: i32, %arg1: i32) -> (i32, i32) {
    %c0_i32 = arith.constant 0 : i32
    return %arg0, %arg1 : i32, i32
  }
  func.func @transform_1(%arg0: i32, %arg1: i32) -> (i32, i32) {
    %c0_i32 = arith.constant 0 : i32
    %c0_i32_0 = arith.constant 0 : i32
    return %arg0, %c0_i32 : i32, i32
  }
  func.func @transform_2(%arg0: i32, %arg1: i32) -> (i32, i32, i32) {
    %c0_i32 = arith.constant 0 : i32
    %c0_i32_0 = arith.constant 0 : i32
    %c0_i32_1 = arith.constant 0 : i32
    return %arg0, %c0_i32, %c0_i32_0 : i32, i32, i32
  }
}

</mosaic_0001>

<llo_original>
// kernel: tpu_custom_call.1
$region0: #{tpu_custom_call.1}
  #allocation0 [shape = 'u32[]', space=smem, size = 0x4, offset = 0x4, fixed_abs, tag = 'smem constant byte address 0x4 - core index']
  #allocation1 [shape = 'u32[144,128]{1,0:T(1,128)}', space=vmem, size = 0x12000, scoped, tag = 'internal scratch']
  #allocation2 [shape = 'f32[8,1]{1,0:T(8,128)}', space=vmem, size = 0x1000, scoped, tag = 'scratch operand']
  #allocation3 [shape = 'f32[8,1]{1,0:T(8,128)}', space=vmem, size = 0x1000, scoped, tag = 'scratch operand']
  #allocation4 [shape = 'f32[8,1]{1,0:T(8,128)}', space=vmem, size = 0x1000, scoped, tag = 'scratch operand']
  %s0 = inlined_call_operand.vmem [shape: f32[8,32], index: 0, kind: input, shape index: {}]
  %s1 = inlined_call_operand.vmem [shape: s32[8,1], index: 1, kind: input, shape index: {}]
  %s2 = inlined_call_operand.hbm [shape: f32[1,8,128], index: 2, kind: output, shape index: {}]
  %s3 = sld [smem:[#allocation0]]
  $region26: #{tpu_custom_call.1} parent=0
    _
  %s5 = ssub.s32 1, %s3
  %s6 = scalar_select 0, %s5, %s3
  $region1: #{tpu_custom_call.1} parent=0
    #allocation5 [shape = 'u8[4096]{0}', space=vmem, size = 0x1000, scoped, tag = 'output window, operand 0, single buffered']
    #allocation6 [shape = 's32[1]{0}', space=sflag, size = 0x4, scoped, tag = 'scoped memory for tpu_custom_call.1']
    %7 = vsyncpa [#allocation6], 0
    // Predicated region
    $region2: #{tpu_custom_call.1} parent=1 // pred_check
      _
    $region3: #{tpu_custom_call.1} parent=1 // pred_check_branch
      %9 = sbr.rel (0) target = $region5
    $region4: #{tpu_custom_call.1} parent=1 // pred_region
      _
    $region5: #{tpu_custom_call.1} parent=1 // pred_fallthru
      _
    // Predicated region
    $region6: #{tpu_custom_call.1} parent=1 // pred_check
      _
    $region7: #{tpu_custom_call.1} parent=1 // pred_check_branch
      %11 = sbr.rel (0) target = $region9
    $region8: #{tpu_custom_call.1} parent=1 // pred_region
      _
    $region9: #{tpu_custom_call.1} parent=1 // pred_fallthru
      _
    %p12 = scmp.eq.s32.totalorder 0, 0
    // Predicated region
    $region10: #{tpu_custom_call.1} parent=1 // pred_check
      %p13 = pneg %p12
    $region11: #{tpu_custom_call.1} parent=1 // pred_check_branch
      %15 = sbr.rel (%p13) target = $region13
    $region12: #{tpu_custom_call.1} parent=1 // pred_region
      %vm16 = vcmask 7168
      %17 = vst.msk [vmem:[#allocation2] sm:$0xff] %vm16, -inf
      %18 = vst.msk [vmem:[#allocation3] sm:$0xff] %vm16, 0.0
      %19 = vst.msk [vmem:[#allocation4] sm:$0xff] %vm16, 0.0
    $region13: #{tpu_custom_call.1} parent=1 // pred_fallthru
      _
    %v20 = vld [vmem:[%s0] sm:$0xff]
    %v21 = vld [vmem:[%s1] sm:$0xff]
    %v22 = vlaneseq
    %v23 = vand.u32 %v22, 127
    %v24 = vld [vmem:[#allocation2] sm:$0xff]
    %vm25 = vcmask 261120
    %v26 = vsel %vm25, %v20, -inf
    %27 = vmax.xlane.f32.xlu0 %v26
    %v28 = vpop.xlane.xlu0 %27
    %v29 = vmax.f32 %v24, %v28
    %v30 = vld [vmem:[#allocation3] sm:$0xff]
    %v31 = vsub.f32 %v24, %v29
    %v32 = vmul.f32 %v31, 1.442695
    %v33 = vpow.pop %v32
    %v34 = vmul.f32 %v30, %v33
    %36 = vset.pattern.permute.xlu0 0
    %37 = vperm.xlu0 %36, %v29
    %v38 = vpop.permute.xlu0 %37
    %v40 = vsub.f32 %v20, %v38
    %v41 = vmul.f32 %v40, 1.442695
    %v42 = vpow.pop %v41
    %v43 = vsel %vm25, %v42, 0.0
    %44 = vadd.xlane.f32.xlu0 %v43
    %v45 = vpop.xlane.xlu0 %44
    %v46 = vadd.f32 %v34, %v45
    %vm47 = vcmask 7168
    %48 = vst.msk [vmem:[#allocation3] sm:$0xff] %vm47, %v46
    %49 = vst.msk [vmem:[#allocation2] sm:$0xff] %vm47, %v29
    %s50 = smul.u32 0, 32
    %v51 = vstv %s50
    %v52 = vsub.s32 %v21, %v51
    %v53 = vld [vmem:[#allocation4] sm:$0xff]
    %54 = vset.pattern.permute.xlu0 0
    %55 = vperm.xlu0 %54, %v52
    %v56 = vpop.permute.xlu0 %55
    %vm57 = vcmp.eq.s32.totalorder %v23, %v56
    %v58 = vsel %vm57, %v20, 0.0
    %v59 = vsel %vm25, %v58, 0.0
    %60 = vadd.xlane.f32.xlu0 %v59
    %v61 = vpop.xlane.xlu0 %60
    %v62 = vadd.f32 %v53, %v61
    %63 = vst.msk [vmem:[#allocation4] sm:$0xff] %vm47, %v62
    // Predicated region
    $region14: #{tpu_custom_call.1} parent=1 // pred_check
      %p64 = pneg %p12
    $region15: #{tpu_custom_call.1} parent=1 // pred_check_branch
      %66 = sbr.rel (%p64) target = $region17
    $region16: #{tpu_custom_call.1} parent=1 // pred_region
      %v67 = vlaneseq
      %v68 = vshrl.u32 %v67, 7
      %s69 = smul.u32 0, 8
      %v70 = vstv %s69
      %v71 = vadd.s32 %v68, %v70
      %vm72 = vcmp.lt.s32.totalorder %v71, 8
      %vm73 = vcmp.ne.s32.totalorder %v21, 4294967196
      %vm74 = vmand %vm72, %vm73
      %v75 = vld [vmem:[#allocation3] sm:$0xff]
      %v76 = vlog2.pop %v75
      %v77 = vmul.f32 %v76, 0.6931472
      %v78 = vld [vmem:[#allocation2] sm:$0xff]
      %v79 = vadd.f32 %v77, %v78
      %v80 = vld [vmem:[#allocation4] sm:$0xff]
      %v81 = vsub.f32 %v79, %v80
      %v82 = vsel %vm74, %v81, 0.0
      %v83 = vsel %vm47, %v82, 0.0
      %84 = vadd.xlane.f32.xlu0 %v83
      %v85 = vpop.xlane.xlu0 %84
      %v86 = vrot.slane %v85, 4
      %v87 = vadd.f32 %v85, %v86
      %v88 = vrot.slane %v87, 2
      %v89 = vadd.f32 %v87, %v88
      %v90 = vrot.slane %v89, 1
      %v91 = vadd.f32 %v89, %v90
      %s92 = vtos %v91
      %v93 = vstv %s92
      %94 = vst [vmem:[#allocation5] sm:$0xff] %v93
    $region17: #{tpu_custom_call.1} parent=1 // pred_fallthru
      _
    // Predicated region
    $region18: #{tpu_custom_call.1} parent=1 // pred_check
      _
    $region19: #{tpu_custom_call.1} parent=1 // pred_check_branch
      %96 = sbr.rel (0) target = $region21
    $region20: #{tpu_custom_call.1} parent=1 // pred_region
      %s98 = ssub.s32 128, 128
      %99 = vsyncadd [#allocation6], %s98
      %s101 = sshll.u32 [#allocation5], 4
      %s102 = int_to_ptr.vmem [resolvable:$true] %s101
      %104 = dma.vmem_to_hbm [thread:$0]  %s102, 128, %s2, [#allocation6]
    $region21: #{tpu_custom_call.1} parent=1 // pred_fallthru
      _
    // Predicated region
    $region22: #{tpu_custom_call.1} parent=1 // pred_check
      _
    $region23: #{tpu_custom_call.1} parent=1 // pred_check_branch
      %106 = sbr.rel (0) target = $region25
    $region24: #{tpu_custom_call.1} parent=1 // pred_region
      %107 = dma.done [#allocation6], 128
    $region25: #{tpu_custom_call.1} parent=1 // pred_fallthru
      _
    %108 = vsyncpa [#allocation6], 1

</llo_original>
